<compile_context>
chip_gen: v5e
topology: v5e:2x2
jax: 0.10.0
libtpu: 0.0.40
codegen_flags: <defaults>
</compile_context>

<pallas_src>
import functools

import jax
import jax.numpy as jnp
from jax.experimental import pallas as pl
from jax.experimental.pallas import tpu as pltpu


def _round_up(x, m):
    return (x + m - 1) // m * m


def _muse_qa_kernel(x_ref, m_ref, wh_ref, bh_ref, wse_ref, bse_ref, out_ref):
    # x_ref:   (TM, H)  bf16  flattened (batch*seq) rows of embedded tokens
    # m_ref:   (1, TM)  f32   attention mask, lane-major
    # wh_ref:  (H, H)   bf16  hidden Linear weight, pre-transposed (h = x @ W)
    # bh_ref:  (1, H)   f32
    # wse_ref: (H, 2)   f32   [start | end] span weights, stacked & transposed
    # bse_ref: (1, 2)   f32
    # out_ref: (2, TM)  f32   row 0 = start logits, row 1 = end logits
    h = jnp.dot(x_ref[...], wh_ref[...], preferred_element_type=jnp.float32)
    h = jnp.maximum(h + bh_ref[...], 0.0)                       # (TM, H) f32

    logits = jnp.dot(h, wse_ref[...], preferred_element_type=jnp.float32)
    logits = jnp.maximum(logits + bse_ref[...], 0.0)            # (TM, 2) f32

    # Tiny-tile transpose -> lane-dense (2, TM) store; mask multiply is a
    # dense VPU op against the (1, TM) lane-major mask row.
    out_ref[...] = logits.T * m_ref[...]


@functools.partial(jax.jit, static_argnames=("block_m",))
def muse_qa_forward(input_ids, attention_mask, params, *, block_m=512):
    """Returns (x_start, x_end), each [B, S] float32 — same as MuseQA.forward
    when start/end positions are not given."""
    word_emb = params["word_embeddings"]       # (V, H)
    wh = params["hidden_w"]                    # (H, H)  torch Linear (out, in)
    bh = params["hidden_b"]                    # (H,)
    ws = params["start_w"]                     # (1, H)
    bs = params["start_b"]                     # (1,)
    we = params["end_w"]                       # (1, H)
    be = params["end_b"]                       # (1,)

    B, S = input_ids.shape
    H = word_emb.shape[-1]
    M = B * S

    tm = min(_round_up(block_m, 128), _round_up(M, 128))
    m_pad = _round_up(M, tm)
    n_m = m_pad // tm

    # Frozen-embedding gather directly in bf16 (halves HBM traffic of the
    # dominant [M, H] activation tensor).
    ids_flat = input_ids.reshape(M)
    x_flat = jnp.take(word_emb.astype(jnp.bfloat16), ids_flat, axis=0)  # (M,H)
    mask_flat = attention_mask.astype(jnp.float32).reshape(M)
    if m_pad != M:
        x_flat = jnp.pad(x_flat, ((0, m_pad - M), (0, 0)))
        mask_flat = jnp.pad(mask_flat, (0, m_pad - M))   # padded rows masked out
    mask_row = mask_flat.reshape(1, m_pad)

    # Weight prep: torch-style (out, in) -> (in, out). Hidden weight in bf16;
    # the tiny fused span weight / biases stay f32.
    wh_t = jnp.transpose(wh).astype(jnp.bfloat16)                     # (H, H)
    bh_r = bh.reshape(1, H).astype(jnp.float32)
    wse_t = jnp.concatenate([ws, we], axis=0).T.astype(jnp.float32)   # (H, 2)
    bse_r = jnp.concatenate([bs, be], axis=0).reshape(1, 2).astype(jnp.float32)

    flops = 2 * m_pad * H * H + 2 * m_pad * H * 2
    bytes_accessed = (x_flat.size * 2 + mask_row.size * 4 + wh_t.size * 2
                      + bh_r.size * 4 + wse_t.size * 4 + bse_r.size * 4
                      + 2 * m_pad * 4)

    grid_spec = pltpu.PrefetchScalarGridSpec(
        num_scalar_prefetch=0,
        grid=(n_m,),
        in_specs=[
            pl.BlockSpec((tm, H), lambda m: (m, 0)),    # x (bf16)
            pl.BlockSpec((1, tm), lambda m: (0, m)),    # mask (lane-major)
            pl.BlockSpec((H, H), lambda m: (0, 0)),     # hidden W^T (bf16)
            pl.BlockSpec((1, H), lambda m: (0, 0)),     # hidden bias
            pl.BlockSpec((H, 2), lambda m: (0, 0)),     # [start|end] W^T
            pl.BlockSpec((1, 2), lambda m: (0, 0)),     # [start|end] bias
        ],
        out_specs=pl.BlockSpec((2, tm), lambda m: (0, m)),
    )

    out = pl.pallas_call(
        _muse_qa_kernel,
        out_shape=jax.ShapeDtypeStruct((2, m_pad), jnp.float32),
        grid_spec=grid_spec,
        compiler_params=pltpu.CompilerParams(
            dimension_semantics=("parallel",),
            vmem_limit_bytes=32 * 1024 * 1024),
        cost_estimate=pl.CostEstimate(
            flops=flops, transcendentals=0, bytes_accessed=bytes_accessed),
    )(x_flat, mask_row, wh_t, bh_r, wse_t, bse_r)

    spans = out[:, :M].reshape(2, B, S)
    return spans[0], spans[1]          # x_start, x_end — each (B, S) float32


def _reference_forward(input_ids, attention_mask, params, *, bf16_inputs):
    """Pure-JAX replica of the PyTorch forward (no loss branch).
    If bf16_inputs, the embedding/hidden-weight are rounded through bf16 the
    same way the kernel does (f32 math otherwise)."""
    x = jnp.take(params["word_embeddings"], input_ids, axis=0)
    wh = params["hidden_w"]
    if bf16_inputs:
        x = x.astype(jnp.bfloat16)
        wh = wh.astype(jnp.bfloat16)
    x = x.astype(jnp.float32)
    wh = wh.astype(jnp.float32)
    am = attention_mask.astype(jnp.float32)
    hp = jnp.maximum(
        jnp.einsum("bsh,oh->bso", x, wh, precision=jax.lax.Precision.HIGHEST)
        + params["hidden_b"], 0.0)

    def span(w, b):
        z = jnp.einsum("bsh,oh->bso", hp, w,
                       precision=jax.lax.Precision.HIGHEST) + b
        return jnp.maximum(z, 0.0)[..., 0] * am

    return (span(params["start_w"], params["start_b"]),
            span(params["end_w"], params["end_b"]))


def _init_params(key, vocab, hidden):
    ks = jax.random.split(key, 7)
    scale = 1.0 / jnp.sqrt(hidden)
    return {
        "word_embeddings": jax.random.normal(ks[0], (vocab, hidden), jnp.float32),
        "hidden_w": jax.random.uniform(ks[1], (hidden, hidden), jnp.float32,
                                       -scale, scale),
        "hidden_b": jax.random.uniform(ks[2], (hidden,), jnp.float32, -scale, scale),
        "start_w": jax.random.uniform(ks[3], (1, hidden), jnp.float32, -scale, scale),
        "start_b": jax.random.uniform(ks[4], (1,), jnp.float32, -scale, scale),
        "end_w": jax.random.uniform(ks[5], (1, hidden), jnp.float32, -scale, scale),
        "end_b": jax.random.uniform(ks[6], (1,), jnp.float32, -scale, scale),
    }


if __name__ == "__main__":
    key = jax.random.PRNGKey(0)
    B, S, H, V = 2, 128, 128, 64      # batch, seq (max_length), hidden, vocab

    k_p, k_ids, k_len = jax.random.split(key, 3)
    params = _init_params(k_p, V, H)

    input_ids = jax.random.randint(k_ids, (B, S), 0, V, dtype=jnp.int32)
    # attention mask: first `len` tokens valid per example
    lens = jax.random.randint(k_len, (B,), S // 2, S, dtype=jnp.int32)
    attention_mask = (jnp.arange(S)[None, :] < lens[:, None]).astype(jnp.int32)

    # block_m=128 -> grid=(2,) of balanced "parallel" steps (keeps both v7x TCs busy
    # at this toy size; production sizes use the default 512-row tiles).
    x_start, x_end = muse_qa_forward(input_ids, attention_mask, params,
                                     block_m=128)
    x_start = jax.block_until_ready(x_start)
    x_end = jax.block_until_ready(x_end)

    assert x_start.shape == (B, S) and x_end.shape == (B, S)
    assert x_start.dtype == jnp.float32 and x_end.dtype == jnp.float32

    # Tight check vs a reference with identical bf16 input/weight rounding,
    # plus a loose (bf16-level) check vs the pure-f32 PyTorch-equivalent math.
    rs_bf, re_bf = _reference_forward(input_ids, attention_mask, params,
                                      bf16_inputs=True)
    rs_f, re_f = _reference_forward(input_ids, attention_mask, params,
                                    bf16_inputs=False)
    assert jnp.allclose(x_start, rs_bf, atol=1e-3, rtol=1e-3)
    assert jnp.allclose(x_end, re_bf, atol=1e-3, rtol=1e-3)
    assert jnp.allclose(x_start, rs_f, atol=5e-2, rtol=5e-2)
    assert jnp.allclose(x_end, re_f, atol=5e-2, rtol=5e-2)

    # TODO(synk): CrossEntropyLoss branch (start/end_positions given) is not a
    # kernel hot path and is omitted; only the inference return path is implemented.
    print("KERNEL_OK")
</pallas_src>

<mosaic_0001>
module attributes {stable_mosaic.version = 11 : i64} {
  func.func @_muse_qa_kernel(%arg0: i32, %arg1: memref<128x128xbf16, #tpu.memory_space<vmem>>, %arg2: memref<1x128xf32, #tpu.memory_space<vmem>>, %arg3: memref<128x128xbf16, #tpu.memory_space<vmem>>, %arg4: memref<1x128xf32, #tpu.memory_space<vmem>>, %arg5: memref<128x2xf32, #tpu.memory_space<vmem>>, %arg6: memref<1x2xf32, #tpu.memory_space<vmem>>, %arg7: memref<2x128xf32, #tpu.memory_space<vmem>>) attributes {dimension_semantics = [#tpu.dimension_semantics<parallel>], iteration_bounds = array<i64: 2>, scalar_prefetch = 0 : i64, scratch_operands = 0 : i64, tpu.core_type = #tpu.core_type<tc>, window_params = [{transform_indices = @transform_0, window_bounds = array<i64: 128, 128>}, {transform_indices = @transform_1, window_bounds = array<i64: 1, 128>}, {pipeline_mode = #tpu.pipeline_mode<synchronous>, transform_indices = @transform_2, window_bounds = array<i64: 128, 128>}, {pipeline_mode = #tpu.pipeline_mode<synchronous>, transform_indices = @transform_3, window_bounds = array<i64: 1, 128>}, {pipeline_mode = #tpu.pipeline_mode<synchronous>, transform_indices = @transform_4, window_bounds = array<i64: 128, 2>}, {pipeline_mode = #tpu.pipeline_mode<synchronous>, transform_indices = @transform_5, window_bounds = array<i64: 1, 2>}, {transform_indices = @transform_6, window_bounds = array<i64: 2, 128>}]} {
    %c0 = arith.constant 0 : index
    %c0_0 = arith.constant 0 : index
    %0 = vector.load %arg1[%c0, %c0_0] : memref<128x128xbf16, #tpu.memory_space<vmem>>, vector<128x128xbf16>
    %c0_1 = arith.constant 0 : index
    %c0_2 = arith.constant 0 : index
    %1 = vector.load %arg3[%c0_1, %c0_2] : memref<128x128xbf16, #tpu.memory_space<vmem>>, vector<128x128xbf16>
    %cst = arith.constant dense<0.000000e+00> : vector<128x128xf32>
    %2 = tpu.matmul %0, %1, %cst {dimension_numbers = #tpu.dot_dimension_numbers<[1], [0], [0], [1], [0, 0, 1, 1], [], []>} : vector<128x128xbf16>, vector<128x128xbf16>, vector<128x128xf32> -> vector<128x128xf32>
    %c0_3 = arith.constant 0 : index
    %c0_4 = arith.constant 0 : index
    %3 = vector.load %arg4[%c0_3, %c0_4] : memref<1x128xf32, #tpu.memory_space<vmem>>, vector<1x128xf32>
    %4 = vector.broadcast %3 : vector<1x128xf32> to vector<128x128xf32>
    %5 = arith.addf %2, %4 : vector<128x128xf32>
    %cst_5 = arith.constant 0.000000e+00 : f32
    %6 = vector.broadcast %cst_5 : f32 to vector<128x128xf32>
    %7 = arith.maximumf %5, %6 : vector<128x128xf32>
    %c0_6 = arith.constant 0 : index
    %c0_7 = arith.constant 0 : index
    %8 = vector.load %arg5[%c0_6, %c0_7] : memref<128x2xf32, #tpu.memory_space<vmem>>, vector<128x2xf32>
    %cst_8 = arith.constant dense<0.000000e+00> : vector<128x2xf32>
    %9 = tpu.matmul %7, %8, %cst_8 {dimension_numbers = #tpu.dot_dimension_numbers<[1], [0], [0], [1], [0, 0, 1, 1], [], []>} : vector<128x128xf32>, vector<128x2xf32>, vector<128x2xf32> -> vector<128x2xf32>
    %c0_9 = arith.constant 0 : index
    %c0_10 = arith.constant 0 : index
    %10 = vector.load %arg6[%c0_9, %c0_10] : memref<1x2xf32, #tpu.memory_space<vmem>>, vector<1x2xf32>
    %11 = vector.broadcast %10 : vector<1x2xf32> to vector<128x2xf32>
    %12 = arith.addf %9, %11 : vector<128x2xf32>
    %cst_11 = arith.constant 0.000000e+00 : f32
    %13 = vector.broadcast %cst_11 : f32 to vector<128x2xf32>
    %14 = arith.maximumf %12, %13 : vector<128x2xf32>
    %15 = tpu.transpose %14, [1, 0] : vector<128x2xf32> -> vector<2x128xf32>
    %c0_12 = arith.constant 0 : index
    %c0_13 = arith.constant 0 : index
    %16 = vector.load %arg2[%c0_12, %c0_13] : memref<1x128xf32, #tpu.memory_space<vmem>>, vector<1x128xf32>
    %17 = vector.broadcast %16 : vector<1x128xf32> to vector<2x128xf32>
    %18 = arith.mulf %15, %17 : vector<2x128xf32>
    %c0_14 = arith.constant 0 : index
    %c0_15 = arith.constant 0 : index
    %19 = vector.load %arg7[%c0_14, %c0_15] : memref<2x128xf32, #tpu.memory_space<vmem>>, vector<2x128xf32>
    tpu.vector_store %arg7[%c0_14, %c0_15], %18 {strides = array<i32>} : memref<2x128xf32, #tpu.memory_space<vmem>>, vector<2x128xf32>,
    return
  }
  func.func @transform_0(%arg0: i32) -> (i32, i32) {
    %c0_i32 = arith.constant 0 : i32
    %c0_i32_0 = arith.constant 0 : i32
    return %arg0, %c0_i32 : i32, i32
  }
  func.func @transform_1(%arg0: i32) -> (i32, i32) {
    %c0_i32 = arith.constant 0 : i32
    %c0_i32_0 = arith.constant 0 : i32
    return %c0_i32, %arg0 : i32, i32
  }
  func.func @transform_2(%arg0: i32) -> (i32, i32) {
    %c0_i32 = arith.constant 0 : i32
    %c0_i32_0 = arith.constant 0 : i32
    %c0_i32_1 = arith.constant 0 : i32
    return %c0_i32, %c0_i32_0 : i32, i32
  }
  func.func @transform_3(%arg0: i32) -> (i32, i32) {
    %c0_i32 = arith.constant 0 : i32
    %c0_i32_0 = arith.constant 0 : i32
    %c0_i32_1 = arith.constant 0 : i32
    return %c0_i32, %c0_i32_0 : i32, i32
  }
  func.func @transform_4(%arg0: i32) -> (i32, i32) {
    %c0_i32 = arith.constant 0 : i32
    %c0_i32_0 = arith.constant 0 : i32
    %c0_i32_1 = arith.constant 0 : i32
    return %c0_i32, %c0_i32_0 : i32, i32
  }
  func.func @transform_5(%arg0: i32) -> (i32, i32) {
    %c0_i32 = arith.constant 0 : i32
    %c0_i32_0 = arith.constant 0 : i32
    %c0_i32_1 = arith.constant 0 : i32
    return %c0_i32, %c0_i32_0 : i32, i32
  }
  func.func @transform_6(%arg0: i32) -> (i32, i32) {
    %c0_i32 = arith.constant 0 : i32
    %c0_i32_0 = arith.constant 0 : i32
    return %c0_i32, %arg0 : i32, i32
  }
}

</mosaic_0001>

<llo_original>
// kernel: muse_qa_forward.1
$region0: #{muse_qa_forward.1}
  #allocation0 [shape = 'u32[]', space=smem, size = 0x4, offset = 0x4, fixed_abs, tag = 'smem constant byte address 0x4 - core index']
  #allocation1 [shape = 'u32[72,128]{1,0:T(1,128)}', space=vmem, size = 0x9000, scoped, tag = 'internal scratch']
  %s0 = inlined_call_operand.vmem [shape: bf16[256,128], index: 0, kind: input, shape index: {}]
  %s1 = inlined_call_operand.vmem [shape: f32[1,256], index: 1, kind: input, shape index: {}]
  %s2 = inlined_call_operand.vmem [shape: bf16[128,128], index: 2, kind: input, shape index: {}]
  %s3 = inlined_call_operand.vmem [shape: f32[1,128], index: 3, kind: input, shape index: {}]
  %s4 = inlined_call_operand.vmem [shape: f32[128,2], index: 4, kind: input, shape index: {}]
  %s5 = inlined_call_operand.vmem [shape: f32[1,2], index: 5, kind: input, shape index: {}]
  %s6 = inlined_call_operand.vmem [shape: f32[2,256], index: 6, kind: output, shape index: {}]
  %s7 = sld [smem:[#allocation0]]
  $region57: #{muse_qa_forward.1} parent=0
    _
  %s9 = ssub.s32 1, %s7
  %s10 = scalar_select 0, %s9, %s7
  loop: start=0, step=1, limit=4
  $region2: #{muse_qa_forward.1} parent=0 // loop_pre_header
    _
  $region3: #{muse_qa_forward.1} parent=0 // loop_header
    %s12 = sphi 0, %s16
    %p13 = scmp.ge.s32.totalorder %s12, 4
    %s22 = sphi 0, %s24
    %s25 = sphi 0, %s22
    %s26 = sphi 0, %s25
    %s42 = sphi 0, %s26
    %s48 = sphi 0, %s50
    %s51 = sphi 0, %s48
    %s52 = sphi 0, %s51
    %s68 = sphi 0, %s52
    %s72 = sphi 0, %s72
    %s74 = sphi 0, %s72
    %s75 = sphi 0, %s74
    %s89 = sphi 0, %s75
    %s93 = sphi 0, %s93
    %s95 = sphi 0, %s93
    %s96 = sphi 0, %s95
    %s110 = sphi 0, %s96
    %s114 = sphi 0, %s114
    %s116 = sphi 0, %s114
    %s117 = sphi 0, %s116
    %s131 = sphi 0, %s117
    %s135 = sphi 0, %s135
    %s137 = sphi 0, %s135
    %s138 = sphi 0, %s137
    %s152 = sphi 0, %s138
    %s158 = sphi 0, %s160
    %s161 = sphi 0, %s158
    %s162 = sphi 0, %s161
    %s178 = sphi 0, %s162
  $region4: #{muse_qa_forward.1} parent=0 // loop_header_branch
    %15 = sbr.rel (%p13) target = $region8
  $region5: #{muse_qa_forward.1} parent=0 // loop_body
    %s17 = ssub.s32 %s12, 1
    %s18 = ssub.s32 %s12, 2
    %s19 = sadd.s32 %s12, 1
    %s20 = ssub.s32 %s12, %s19
    %p21 = scmp.eq.s32.totalorder %s20, 0
    %s23 = sadd.s32 %s22, 1
    %s24 = scalar_select %p21, %s22, %s23
    %p27 = pneg %p21
    %p28 = scmp.eq.s32.totalorder %s12, 1
    %p29 = por %p27, %p28
    %p30 = scmp.ne.s32.totalorder %s22, %s25
    %p31 = scmp.eq.s32.totalorder %s12, 0
    %p32 = por %p30, %p31
    %p33 = scmp.ne.s32.totalorder %s22, %s25
    %p34 = scmp.eq.s32.totalorder %s17, 1
    %p35 = por %p33, %p34
    %p36 = scmp.ne.s32.totalorder %s25, %s26
    %p37 = scmp.eq.s32.totalorder %s17, 0
    %p38 = por %p36, %p37
    %p39 = scmp.ne.s32.totalorder %s25, %s26
    %p40 = scmp.eq.s32.totalorder %s18, 1
    %p41 = por %p39, %p40
    %p43 = scmp.ne.s32.totalorder %s26, %s42
    %p44 = scmp.eq.s32.totalorder %s18, 0
    %p45 = por %p43, %p44
    %s46 = ssub.s32 %s12, %s19
    %p47 = scmp.eq.s32.totalorder %s46, 0
    %s49 = sadd.s32 %s48, 1
    %s50 = scalar_select %p47, %s48, %s49
    %p53 = pneg %p47
    %p54 = scmp.eq.s32.totalorder %s12, 1
    %p55 = por %p53, %p54
    %p56 = scmp.ne.s32.totalorder %s48, %s51
    %p57 = scmp.eq.s32.totalorder %s12, 0
    %p58 = por %p56, %p57
    %p59 = scmp.ne.s32.totalorder %s48, %s51
    %p60 = scmp.eq.s32.totalorder %s17, 1
    %p61 = por %p59, %p60
    %p62 = scmp.ne.s32.totalorder %s51, %s52
    %p63 = scmp.eq.s32.totalorder %s17, 0
    %p64 = por %p62, %p63
    %p65 = scmp.ne.s32.totalorder %s51, %s52
    %p66 = scmp.eq.s32.totalorder %s18, 1
    %p67 = por %p65, %p66
    %p69 = scmp.ne.s32.totalorder %s52, %s68
    %p70 = scmp.eq.s32.totalorder %s18, 0
    %p71 = por %p69, %p70
    %s73 = sadd.s32 %s72, 1
    %p76 = scmp.eq.s32.totalorder %s12, 1
    %p77 = scmp.ne.s32.totalorder %s72, %s74
    %p78 = scmp.eq.s32.totalorder %s12, 0
    %p79 = por %p77, %p78
    %p80 = scmp.ne.s32.totalorder %s72, %s74
    %p81 = scmp.eq.s32.totalorder %s17, 1
    %p82 = por %p80, %p81
    %p83 = scmp.ne.s32.totalorder %s74, %s75
    %p84 = scmp.eq.s32.totalorder %s17, 0
    %p85 = por %p83, %p84
    %p86 = scmp.ne.s32.totalorder %s74, %s75
    %p87 = scmp.eq.s32.totalorder %s18, 1
    %p88 = por %p86, %p87
    %p90 = scmp.ne.s32.totalorder %s75, %s89
    %p91 = scmp.eq.s32.totalorder %s18, 0
    %p92 = por %p90, %p91
    %s94 = sadd.s32 %s93, 1
    %p97 = scmp.eq.s32.totalorder %s12, 1
    %p98 = scmp.ne.s32.totalorder %s93, %s95
    %p99 = scmp.eq.s32.totalorder %s12, 0
    %p100 = por %p98, %p99
    %p101 = scmp.ne.s32.totalorder %s93, %s95
    %p102 = scmp.eq.s32.totalorder %s17, 1
    %p103 = por %p101, %p102
    %p104 = scmp.ne.s32.totalorder %s95, %s96
    %p105 = scmp.eq.s32.totalorder %s17, 0
    %p106 = por %p104, %p105
    %p107 = scmp.ne.s32.totalorder %s95, %s96
    %p108 = scmp.eq.s32.totalorder %s18, 1
    %p109 = por %p107, %p108
    %p111 = scmp.ne.s32.totalorder %s96, %s110
    %p112 = scmp.eq.s32.totalorder %s18, 0
    %p113 = por %p111, %p112
    %s115 = sadd.s32 %s114, 1
    %p118 = scmp.eq.s32.totalorder %s12, 1
    %p119 = scmp.ne.s32.totalorder %s114, %s116
    %p120 = scmp.eq.s32.totalorder %s12, 0
    %p121 = por %p119, %p120
    %p122 = scmp.ne.s32.totalorder %s114, %s116
    %p123 = scmp.eq.s32.totalorder %s17, 1
    %p124 = por %p122, %p123
    %p125 = scmp.ne.s32.totalorder %s116, %s117
    %p126 = scmp.eq.s32.totalorder %s17, 0
    %p127 = por %p125, %p126
    %p128 = scmp.ne.s32.totalorder %s116, %s117
    %p129 = scmp.eq.s32.totalorder %s18, 1
    %p130 = por %p128, %p129
    %p132 = scmp.ne.s32.totalorder %s117, %s131
    %p133 = scmp.eq.s32.totalorder %s18, 0
    %p134 = por %p132, %p133
    %s136 = sadd.s32 %s135, 1
    %p139 = scmp.eq.s32.totalorder %s12, 1
    %p140 = scmp.ne.s32.totalorder %s135, %s137
    %p141 = scmp.eq.s32.totalorder %s12, 0
    %p142 = por %p140, %p141
    %p143 = scmp.ne.s32.totalorder %s135, %s137
    %p144 = scmp.eq.s32.totalorder %s17, 1
    %p145 = por %p143, %p144
    %p146 = scmp.ne.s32.totalorder %s137, %s138
    %p147 = scmp.eq.s32.totalorder %s17, 0
    %p148 = por %p146, %p147
    %p149 = scmp.ne.s32.totalorder %s137, %s138
    %p150 = scmp.eq.s32.totalorder %s18, 1
    %p151 = por %p149, %p150
    %p153 = scmp.ne.s32.totalorder %s138, %s152
    %p154 = scmp.eq.s32.totalorder %s18, 0
    %p155 = por %p153, %p154
    %s156 = ssub.s32 %s12, %s19
    %p157 = scmp.eq.s32.totalorder %s156, 0
    %s159 = sadd.s32 %s158, 1
    %s160 = scalar_select %p157, %s158, %s159
    %p163 = pneg %p157
    %p164 = scmp.eq.s32.totalorder %s12, 1
    %p165 = por %p163, %p164
    %p166 = scmp.ne.s32.totalorder %s158, %s161
    %p167 = scmp.eq.s32.totalorder %s12, 0
    %p168 = por %p166, %p167
    %p169 = scmp.ne.s32.totalorder %s158, %s161
    %p170 = scmp.eq.s32.totalorder %s17, 1
    %p171 = por %p169, %p170
    %p172 = scmp.ne.s32.totalorder %s161, %s162
    %p173 = scmp.eq.s32.totalorder %s17, 0
    %p174 = por %p172, %p173
    %p175 = scmp.ne.s32.totalorder %s161, %s162
    %p176 = scmp.eq.s32.totalorder %s18, 1
    %p177 = por %p175, %p176
    %p179 = scmp.ne.s32.totalorder %s162, %s178
    %p180 = scmp.eq.s32.totalorder %s18, 0
    %p181 = por %p179, %p180
    %p182 = scmp.le.s32.totalorder 1, %s12
    %p183 = scmp.lt.s32.totalorder %s12, 3
    %p184 = pnand %p182, %p183
    %p185 = pneg %p184
    // Predicated region
    $region9: #{muse_qa_forward.1} parent=5 // pred_check
      _
    $region10: #{muse_qa_forward.1} parent=5 // pred_check_branch
      %187 = sbr.rel (%p184) target = $region12
    $region11: #{muse_qa_forward.1} parent=5 // pred_region
      %s188 = ssub.s32 %s12, 1
      // Predicated region
      $region13: #{muse_qa_forward.1} parent=11 // pred_check
        %p189 = pneg %p85
      $region14: #{muse_qa_forward.1} parent=11 // pred_check_branch
        %191 = sbr.rel (%p189) target = $region16
      $region15: #{muse_qa_forward.1} parent=11 // pred_region
        _
      $region16: #{muse_qa_forward.1} parent=11 // pred_fallthru
        _
      // Predicated region
      $region17: #{muse_qa_forward.1} parent=11 // pred_check
        %p192 = pneg %p106
      $region18: #{muse_qa_forward.1} parent=11 // pred_check_branch
        %194 = sbr.rel (%p192) target = $region20
      $region19: #{muse_qa_forward.1} parent=11 // pred_region
        _
      $region20: #{muse_qa_forward.1} parent=11 // pred_fallthru
        _
      // Predicated region
      $region21: #{muse_qa_forward.1} parent=11 // pred_check
        %p195 = pneg %p127
      $region22: #{muse_qa_forward.1} parent=11 // pred_check_branch
        %197 = sbr.rel (%p195) target = $region24
      $region23: #{muse_qa_forward.1} parent=11 // pred_region
        _
      $region24: #{muse_qa_forward.1} parent=11 // pred_fallthru
        _
      // Predicated region
      $region25: #{muse_qa_forward.1} parent=11 // pred_check
        %p198 = pneg %p148
      $region26: #{muse_qa_forward.1} parent=11 // pred_check_branch
        %200 = sbr.rel (%p198) target = $region28
      $region27: #{muse_qa_forward.1} parent=11 // pred_region
        _
      $region28: #{muse_qa_forward.1} parent=11 // pred_fallthru
        _
    $region12: #{muse_qa_forward.1} parent=5 // pred_fallthru
      _
    %p201 = scmp.lt.s32.totalorder %s12, 2
    // Predicated region
    $region29: #{muse_qa_forward.1} parent=5 // pred_check
      %p202 = pneg %p201
    $region30: #{muse_qa_forward.1} parent=5 // pred_check_branch
      %204 = sbr.rel (%p202) target = $region32
    $region31: #{muse_qa_forward.1} parent=5 // pred_region
      // Predicated region
      $region33: #{muse_qa_forward.1} parent=31 // pred_check
        %p205 = pneg %p32
      $region34: #{muse_qa_forward.1} parent=31 // pred_check_branch
        %207 = sbr.rel (%p205) target = $region36
      $region35: #{muse_qa_forward.1} parent=31 // pred_region
        %s208 = smul.u32 16, %s12
        %p209 = scmp.lt.s32.totalorder %s208, 31
        %s210 = scalar_select %p209, %s208, 31
        %s211 = smul.addr %s210, 4
        %s212 = scalar_lea.vmem %s0, %s211
        %s213 = smul.u32 16, %s12
      $region36: #{muse_qa_forward.1} parent=31 // pred_fallthru
        _
      // Predicated region
      $region37: #{muse_qa_forward.1} parent=31 // pred_check
        %p214 = pneg %p58
      $region38: #{muse_qa_forward.1} parent=31 // pred_check_branch
        %216 = sbr.rel (%p214) target = $region40
      $region39: #{muse_qa_forward.1} parent=31 // pred_region
        %p217 = scmp.lt.s32.totalorder %s12, 1
        %s218 = scalar_select %p217, %s12, 1
        %s219 = scalar_lea.vmem %s1, %s218
      $region40: #{muse_qa_forward.1} parent=31 // pred_fallthru
        _
    $region32: #{muse_qa_forward.1} parent=5 // pred_fallthru
      _
    %p220 = scmp.le.s32.totalorder 1, %s12
    %p221 = scmp.lt.s32.totalorder %s12, 3
    %p222 = pnand %p220, %p221
    %p223 = pneg %p222
    // Predicated region
    $region41: #{muse_qa_forward.1} parent=5 // pred_check
      _
    $region42: #{muse_qa_forward.1} parent=5 // pred_check_branch
      %225 = sbr.rel (%p222) target = $region44
    $region43: #{muse_qa_forward.1} parent=5 // pred_region
      %s226 = ssub.s32 %s12, 1
      %s227 = smul.u32 16, %s17
      %p228 = scmp.lt.s32.totalorder %s227, 31
      %s229 = scalar_select %p228, %s227, 31
      %s230 = smul.addr %s229, 4
      %s231 = scalar_lea.vmem %s0, %s230
      %p232 = pneg %p38
      %p233 = pneg %p35
      %p234 = scmp.lt.s32.totalorder %s17, 1
      %s235 = scalar_select %p234, %s17, 1
      %s236 = scalar_lea.vmem %s1, %s235
      %p237 = pneg %p64
      %p238 = pneg %p61
      %p239 = pneg %p85
      %p240 = pneg %p82
      %p241 = pneg %p106
      %p242 = pneg %p103
      %p243 = pneg %p127
      %p244 = pneg %p124
      %p245 = pneg %p148
      %p246 = pneg %p145
      %p247 = pneg %p174
      %p248 = pneg %p171
      %p249 = scmp.lt.s32.totalorder %s17, 1
      %s250 = scalar_select %p249, %s17, 1
      %s251 = smul.addr %s250, 2
      %s252 = scalar_lea.vmem %s6, %s251
      %s253 = smul.u32 16, %s17
      %p254 = scmp.lt.s32.totalorder %s253, 31
      %s255 = scalar_select %p254, %s253, 31
      %s256 = smul.addr %s255, 4
      %s257 = scalar_lea.vmem %s0, %s256
      %s258 = smul.u32 16, %s17
      %p259 = scmp.lt.s32.totalorder %s17, 1
      %s260 = scalar_select %p259, %s17, 1
      %s261 = scalar_lea.vmem %s1, %s260
      %p262 = scmp.lt.s32.totalorder %s17, 1
      %s263 = scalar_select %p262, %s17, 1
      %s264 = smul.addr %s263, 2
      %s265 = scalar_lea.vmem %s6, %s264
      %v266 = vld [vmem:[%s257] sm:$0xf]
      %v267 = vld [vmem:[%s257 + $0x4] sm:$0xf]
      %v268 = vld [vmem:[%s257 + $0x8] sm:$0xf]
      %v269 = vld [vmem:[%s257 + $0xc] sm:$0xf]
      %v270 = vld [vmem:[%s257 + $0x10] sm:$0xf]
      %v271 = vld [vmem:[%s257 + $0x14] sm:$0xf]
      %v272 = vld [vmem:[%s257 + $0x18] sm:$0xf]
      %v273 = vld [vmem:[%s257 + $0x1c] sm:$0xf]
      %v274 = vld [vmem:[%s257 + $0x20] sm:$0xf]
      %v275 = vld [vmem:[%s257 + $0x24] sm:$0xf]
      %v276 = vld [vmem:[%s257 + $0x28] sm:$0xf]
      %v277 = vld [vmem:[%s257 + $0x2c] sm:$0xf]
      %v278 = vld [vmem:[%s257 + $0x30] sm:$0xf]
      %v279 = vld [vmem:[%s257 + $0x34] sm:$0xf]
      %v280 = vld [vmem:[%s257 + $0x38] sm:$0xf]
      %v281 = vld [vmem:[%s257 + $0x3c] sm:$0xf]
      %v282 = vld [vmem:[%s2] sm:$0xf]
      %v283 = vld [vmem:[%s2 + $0x4] sm:$0xf]
      %v284 = vld [vmem:[%s2 + $0x8] sm:$0xf]
      %v285 = vld [vmem:[%s2 + $0xc] sm:$0xf]
      %v286 = vld [vmem:[%s2 + $0x10] sm:$0xf]
      %v287 = vld [vmem:[%s2 + $0x14] sm:$0xf]
      %v288 = vld [vmem:[%s2 + $0x18] sm:$0xf]
      %v289 = vld [vmem:[%s2 + $0x1c] sm:$0xf]
      %v290 = vld [vmem:[%s2 + $0x20] sm:$0xf]
      %v291 = vld [vmem:[%s2 + $0x24] sm:$0xf]
      %v292 = vld [vmem:[%s2 + $0x28] sm:$0xf]
      %v293 = vld [vmem:[%s2 + $0x2c] sm:$0xf]
      %v294 = vld [vmem:[%s2 + $0x30] sm:$0xf]
      %v295 = vld [vmem:[%s2 + $0x34] sm:$0xf]
      %v296 = vld [vmem:[%s2 + $0x38] sm:$0xf]
      %v297 = vld [vmem:[%s2 + $0x3c] sm:$0xf]
      %v298 = vld [vmem:[%s3] sm:$0x1]
      %v300 = vperm.slane %v298, 0
      %v318 = vunpack.c.l.b16 %v266
      %v319 = vunpack.c.l.b16 %v267
      %v320 = vunpack.c.l.b16 %v268
      %v321 = vunpack.c.l.b16 %v269
      %v322 = vunpack.c.l.b16 %v270
      %v323 = vunpack.c.l.b16 %v271
      %v324 = vunpack.c.l.b16 %v272
      %v325 = vunpack.c.l.b16 %v273
      %v326 = vunpack.c.l.b16 %v274
      %v327 = vunpack.c.l.b16 %v275
      %v328 = vunpack.c.l.b16 %v276
      %v329 = vunpack.c.l.b16 %v277
      %v330 = vunpack.c.l.b16 %v278
      %v331 = vunpack.c.l.b16 %v279
      %v332 = vunpack.c.l.b16 %v280
      %v333 = vunpack.c.l.b16 %v281
      %v334 = vpack.c.b16 %v319, %v318
      %v335 = vpack.c.b16 %v321, %v320
      %v336 = vpack.c.b16 %v323, %v322
      %v337 = vpack.c.b16 %v325, %v324
      %v338 = vpack.c.b16 %v327, %v326
      %v339 = vpack.c.b16 %v329, %v328
      %v340 = vpack.c.b16 %v331, %v330
      %v341 = vpack.c.b16 %v333, %v332
      %v366 = vunpack.c.l.b16 %v282
      %v367 = vunpack.c.l.b16 %v283
      %v368 = vunpack.c.l.b16 %v284
      %v369 = vunpack.c.l.b16 %v285
      %v370 = vunpack.c.l.b16 %v286
      %v371 = vunpack.c.l.b16 %v287
      %v372 = vunpack.c.l.b16 %v288
      %v373 = vunpack.c.l.b16 %v289
      %v374 = vunpack.c.l.b16 %v290
      %v375 = vunpack.c.l.b16 %v291
      %v376 = vunpack.c.l.b16 %v292
      %v377 = vunpack.c.l.b16 %v293
      %v378 = vunpack.c.l.b16 %v294
      %v379 = vunpack.c.l.b16 %v295
      %v380 = vunpack.c.l.b16 %v296
      %v381 = vunpack.c.l.b16 %v297
      %v382 = vpack.c.b16 %v367, %v366
      %v383 = vpack.c.b16 %v369, %v368
      %v384 = vpack.c.b16 %v371, %v370
      %v385 = vpack.c.b16 %v373, %v372
      %v386 = vpack.c.b16 %v375, %v374
      %v387 = vpack.c.b16 %v377, %v376
      %v388 = vpack.c.b16 %v379, %v378
      %v389 = vpack.c.b16 %v381, %v380
      %398 = vmatpush.bf16.msra.mxu0 %v389
      %399 = vmatpush.bf16.msra.mxu0 %v388
      %400 = vmatpush.bf16.msra.mxu0 %v387
      %401 = vmatpush.bf16.msra.mxu0 %v386
      %402 = vmatpush.bf16.msra.mxu0 %v385
      %403 = vmatpush.bf16.msra.mxu0 %v384
      %404 = vmatpush.bf16.msra.mxu0 %v383
      %405 = vmatpush.bf16.msra.mxu0 %v382
      %406 = vmatmul.bf16.gmra.mxu0 %v334
      %v407 = vpop.f32.mrf.mxu0
      %v408 = vadd.f32 %v300, %v407
      %v409 = vpop.f32.mrf.mxu0
      %v410 = vadd.f32 %v300, %v409
      %411 = vmatmul.bf16.gmra.mxu0 %v335
      %v412 = vpop.f32.mrf.mxu0
      %v413 = vadd.f32 %v300, %v412
      %v414 = vpop.f32.mrf.mxu0
      %v415 = vadd.f32 %v300, %v414
      %416 = vmatmul.bf16.gmra.mxu0 %v336
      %v417 = vpop.f32.mrf.mxu0
      %v418 = vadd.f32 %v300, %v417
      %v419 = vpop.f32.mrf.mxu0
      %v420 = vadd.f32 %v300, %v419
      %421 = vmatmul.bf16.gmra.mxu0 %v337
      %v422 = vpop.f32.mrf.mxu0
      %v423 = vadd.f32 %v300, %v422
      %v424 = vpop.f32.mrf.mxu0
      %v425 = vadd.f32 %v300, %v424
      %426 = vmatmul.bf16.gmra.mxu0 %v338
      %v427 = vpop.f32.mrf.mxu0
      %v428 = vadd.f32 %v300, %v427
      %v429 = vpop.f32.mrf.mxu0
      %v430 = vadd.f32 %v300, %v429
      %431 = vmatmul.bf16.gmra.mxu0 %v339
      %v432 = vpop.f32.mrf.mxu0
      %v433 = vadd.f32 %v300, %v432
      %v434 = vpop.f32.mrf.mxu0
      %v435 = vadd.f32 %v300, %v434
      %436 = vmatmul.bf16.gmra.mxu0 %v340
      %v437 = vpop.f32.mrf.mxu0
      %v438 = vadd.f32 %v300, %v437
      %v439 = vpop.f32.mrf.mxu0
      %v440 = vadd.f32 %v300, %v439
      %441 = vmatmul.bf16.gmra.mxu0 %v341
      %v442 = vpop.f32.mrf.mxu0
      %v443 = vadd.f32 %v300, %v442
      %v444 = vpop.f32.mrf.mxu0
      %v445 = vadd.f32 %v300, %v444
      %446 = vdwg.mxu0
      %v447 = vmax.f32 %v408, 0.0
      %v448 = vmax.f32 %v410, 0.0
      %v449 = vmax.f32 %v413, 0.0
      %v450 = vmax.f32 %v415, 0.0
      %v451 = vmax.f32 %v418, 0.0
      %v452 = vmax.f32 %v420, 0.0
      %v453 = vmax.f32 %v423, 0.0
      %v454 = vmax.f32 %v425, 0.0
      %v455 = vmax.f32 %v428, 0.0
      %v456 = vmax.f32 %v430, 0.0
      %v457 = vmax.f32 %v433, 0.0
      %v458 = vmax.f32 %v435, 0.0
      %v459 = vmax.f32 %v438, 0.0
      %v460 = vmax.f32 %v440, 0.0
      %v461 = vmax.f32 %v443, 0.0
      %v462 = vmax.f32 %v445, 0.0
      %v463 = vld [vmem:[%s4] sm:$0xff]
      %v464 = vld [vmem:[%s4 + $0x8] sm:$0xff]
      %v465 = vld [vmem:[%s4 + $0x10] sm:$0xff]
      %v466 = vld [vmem:[%s4 + $0x18] sm:$0xff]
      %v467 = vld [vmem:[%s4 + $0x20] sm:$0xff]
      %v468 = vld [vmem:[%s4 + $0x28] sm:$0xff]
      %v469 = vld [vmem:[%s4 + $0x30] sm:$0xff]
      %v470 = vld [vmem:[%s4 + $0x38] sm:$0xff]
      %v471 = vld [vmem:[%s4 + $0x40] sm:$0xff]
      %v472 = vld [vmem:[%s4 + $0x48] sm:$0xff]
      %v473 = vld [vmem:[%s4 + $0x50] sm:$0xff]
      %v474 = vld [vmem:[%s4 + $0x58] sm:$0xff]
      %v475 = vld [vmem:[%s4 + $0x60] sm:$0xff]
      %v476 = vld [vmem:[%s4 + $0x68] sm:$0xff]
      %v477 = vld [vmem:[%s4 + $0x70] sm:$0xff]
      %v478 = vld [vmem:[%s4 + $0x78] sm:$0xff]
      %v479 = vld [vmem:[%s5] sm:$0x1]
      %v481 = vperm.slane %v479, 0
      %483 = vmatpush.msra.mxu0 %v478
      %484 = vmatpush.msra.mxu0 %v477
      %485 = vmatpush.msra.mxu0 %v476
      %486 = vmatpush.msra.mxu0 %v475
      %487 = vmatpush.msra.mxu0 %v474
      %488 = vmatpush.msra.mxu0 %v473
      %489 = vmatpush.msra.mxu0 %v472
      %490 = vmatpush.msra.mxu0 %v471
      %491 = vmatpush.msra.mxu0 %v470
      %492 = vmatpush.msra.mxu0 %v469
      %493 = vmatpush.msra.mxu0 %v468
      %494 = vmatpush.msra.mxu0 %v467
      %495 = vmatpush.msra.mxu0 %v466
      %496 = vmatpush.msra.mxu0 %v465
      %497 = vmatpush.msra.mxu0 %v464
      %498 = vmatpush.msra.mxu0 %v463
      %499 = vmatmul.f32.gmra.mxu0 %v447
      %v500 = vpop.f32.mrf.mxu0
      %v501 = vadd.f32 %v481, %v500
      %502 = vmatmul.f32.gmra.mxu0 %v448
      %v503 = vpop.f32.mrf.mxu0
      %v504 = vadd.f32 %v481, %v503
      %505 = vmatmul.f32.gmra.mxu0 %v449
      %v506 = vpop.f32.mrf.mxu0
      %v507 = vadd.f32 %v481, %v506
      %508 = vmatmul.f32.gmra.mxu0 %v450
      %v509 = vpop.f32.mrf.mxu0
      %v510 = vadd.f32 %v481, %v509
      %511 = vmatmul.f32.gmra.mxu0 %v451
      %v512 = vpop.f32.mrf.mxu0
      %v513 = vadd.f32 %v481, %v512
      %514 = vmatmul.f32.gmra.mxu0 %v452
      %v515 = vpop.f32.mrf.mxu0
      %v516 = vadd.f32 %v481, %v515
      %517 = vmatmul.f32.gmra.mxu0 %v453
      %v518 = vpop.f32.mrf.mxu0
      %v519 = vadd.f32 %v481, %v518
      %520 = vmatmul.f32.gmra.mxu0 %v454
      %v521 = vpop.f32.mrf.mxu0
      %v522 = vadd.f32 %v481, %v521
      %523 = vmatmul.f32.gmra.mxu0 %v455
      %v524 = vpop.f32.mrf.mxu0
      %v525 = vadd.f32 %v481, %v524
      %526 = vmatmul.f32.gmra.mxu0 %v456
      %v527 = vpop.f32.mrf.mxu0
      %v528 = vadd.f32 %v481, %v527
      %529 = vmatmul.f32.gmra.mxu0 %v457
      %v530 = vpop.f32.mrf.mxu0
      %v531 = vadd.f32 %v481, %v530
      %532 = vmatmul.f32.gmra.mxu0 %v458
      %v533 = vpop.f32.mrf.mxu0
      %v534 = vadd.f32 %v481, %v533
      %535 = vmatmul.f32.gmra.mxu0 %v459
      %v536 = vpop.f32.mrf.mxu0
      %v537 = vadd.f32 %v481, %v536
      %538 = vmatmul.f32.gmra.mxu0 %v460
      %v539 = vpop.f32.mrf.mxu0
      %v540 = vadd.f32 %v481, %v539
      %541 = vmatmul.f32.gmra.mxu0 %v461
      %v542 = vpop.f32.mrf.mxu0
      %v543 = vadd.f32 %v481, %v542
      %544 = vmatmul.f32.gmra.mxu0 %v462
      %v545 = vpop.f32.mrf.mxu0
      %v546 = vadd.f32 %v481, %v545
      %547 = vdwg.mxu0
      %v548 = vmax.f32 %v501, 0.0
      %v549 = vmax.f32 %v504, 0.0
      %v550 = vmax.f32 %v507, 0.0
      %v551 = vmax.f32 %v510, 0.0
      %v552 = vmax.f32 %v513, 0.0
      %v553 = vmax.f32 %v516, 0.0
      %v554 = vmax.f32 %v519, 0.0
      %v555 = vmax.f32 %v522, 0.0
      %v556 = vmax.f32 %v525, 0.0
      %v557 = vmax.f32 %v528, 0.0
      %v558 = vmax.f32 %v531, 0.0
      %v559 = vmax.f32 %v534, 0.0
      %v560 = vmax.f32 %v537, 0.0
      %v561 = vmax.f32 %v540, 0.0
      %v562 = vmax.f32 %v543, 0.0
      %v563 = vmax.f32 %v546, 0.0
      %564 = vxpose.xlu0.b32.start [1/16] %v548, 128
      %565 = vxpose.xlu0.b32.cont [2/16] %v549, 128
      %566 = vxpose.xlu0.b32.cont [3/16] %v550, 128
      %567 = vxpose.xlu0.b32.cont [4/16] %v551, 128
      %568 = vxpose.xlu0.b32.cont [5/16] %v552, 128
      %569 = vxpose.xlu0.b32.cont [6/16] %v553, 128
      %570 = vxpose.xlu0.b32.cont [7/16] %v554, 128
      %571 = vxpose.xlu0.b32.cont [8/16] %v555, 128
      %572 = vxpose.xlu0.b32.cont [9/16] %v556, 128
      %573 = vxpose.xlu0.b32.cont [10/16] %v557, 128
      %574 = vxpose.xlu0.b32.cont [11/16] %v558, 128
      %575 = vxpose.xlu0.b32.cont [12/16] %v559, 128
      %576 = vxpose.xlu0.b32.cont [13/16] %v560, 128
      %577 = vxpose.xlu0.b32.cont [14/16] %v561, 128
      %578 = vxpose.xlu0.b32.cont [15/16] %v562, 128
      %579 = vxpose.xlu0.b32.end [16/16] %v563, 128
      %v580 = vpop.trf.xlu0
      %v581 = vpop.trf.xlu0
      %v582 = vpop.trf.xlu0
      %v583 = vpop.trf.xlu0
      %v584 = vpop.trf.xlu0
      %v585 = vpop.trf.xlu0
      %v586 = vpop.trf.xlu0
      %v587 = vpop.trf.xlu0
      %v588 = vpop.trf.xlu0
      %v589 = vpop.trf.xlu0
      %v590 = vpop.trf.xlu0
      %v591 = vpop.trf.xlu0
      %v592 = vpop.trf.xlu0
      %v593 = vpop.trf.xlu0
      %v594 = vpop.trf.xlu0
      %v595 = vpop.trf.xlu0
      %v596 = vld [vmem:[%s261] sm:$0x1]
      %v598 = vperm.slane %v596, 0
      %v600 = vmul.f32 %v580, %v598
      %601 = vst [vmem:[%s265] sm:$0x3] %v600
      %p602 = scmp.lt.s32.totalorder %s17, 1
      %s603 = scalar_select %p602, %s17, 1
      %s604 = smul.addr %s603, 2
      %s605 = scalar_lea.vmem %s6, %s604
      // Predicated region
      $region45: #{muse_qa_forward.1} parent=43 // pred_check
        %p606 = pneg %p171
      $region46: #{muse_qa_forward.1} parent=43 // pred_check_branch
        %608 = sbr.rel (%p606) target = $region48
      $region47: #{muse_qa_forward.1} parent=43 // pred_region
        _
      $region48: #{muse_qa_forward.1} parent=43 // pred_fallthru
        _
    $region44: #{muse_qa_forward.1} parent=5 // pred_fallthru
      _
    %p609 = scmp.le.s32.totalorder 2, %s12
    // Predicated region
    $region49: #{muse_qa_forward.1} parent=5 // pred_check
      %p610 = pneg %p609
    $region50: #{muse_qa_forward.1} parent=5 // pred_check_branch
      %612 = sbr.rel (%p610) target = $region52
    $region51: #{muse_qa_forward.1} parent=5 // pred_region
      %s613 = ssub.s32 %s12, 2
      // Predicated region
      $region53: #{muse_qa_forward.1} parent=51 // pred_check
        %p614 = pneg %p177
      $region54: #{muse_qa_forward.1} parent=51 // pred_check_branch
        %616 = sbr.rel (%p614) target = $region56
      $region55: #{muse_qa_forward.1} parent=51 // pred_region
        %p617 = scmp.lt.s32.totalorder %s18, 1
        %s618 = scalar_select %p617, %s18, 1
        %s619 = smul.addr %s618, 2
        %s620 = scalar_lea.vmem %s6, %s619
      $region56: #{muse_qa_forward.1} parent=51 // pred_fallthru
        _
    $region52: #{muse_qa_forward.1} parent=5 // pred_fallthru
      _
  $region6: #{muse_qa_forward.1} parent=0 // loop_footer
    %s16 = sadd.s32 1, %s12
  $region7: #{muse_qa_forward.1} parent=0 // loop_footer_branch
    %11 = sbr.rel target = $region3
  $region8: #{muse_qa_forward.1} parent=0 // loop_exit
    _

</llo_original>
